<compile_context>
chip_gen: v5e
topology: v5e:2x2
jax: 0.10.0
libtpu: 0.0.40
codegen_flags: <defaults>
</compile_context>

<pallas_src>
import jax
import jax.numpy as jnp
from jax.experimental import pallas as pl
from jax.experimental.pallas import tpu as pltpu

LRELU_SLOPE = 0.1
KERNEL_SIZE = 3
DILATIONS = (1, 3)


def get_padding(kernel_size, dilation=1):
    return int((kernel_size * dilation - dilation) / 2)


PAD1 = get_padding(KERNEL_SIZE, DILATIONS[0])   # 1
PAD2 = get_padding(KERNEL_SIZE, DILATIONS[1])   # 3
HALO = PAD1 + PAD2                              # 4 columns of x on each side


def _leaky_relu(x):
    return jnp.where(x > 0, x, LRELU_SLOPE * x)


def _resblock2_kernel(x_ref, halo_ref, w1_ref, b1_ref, w2_ref, b2_ref,
                      o_ref, act_ref, stack_ref, res_ref):
    """Fused (lrelu -> conv d=1 -> +x) -> (lrelu -> conv d=3 -> +x) per tile.

    x_ref:     (1, C, TT)        raw activation tile (read from HBM exactly once)
    halo_ref:  (1, 1, C, 2*HALO) left/right raw halo columns of x for this tile
    w*_ref:    (C, 3*C)          tap-concatenated conv weights, bf16
    b*_ref:    (C, 1)            conv biases, f32
    o_ref:     (1, C, TT)        output tile
    act_ref:   (C, TT+2*HALO)    bf16 scratch: activated slab (layer 1), then
                                 reused as activated layer-1 output (layer 2)
    stack_ref: (3*C, TT+2*PAD2)  bf16 scratch: 3 shifted tap views stacked on K
    res_ref:   (C, TT)           f32 scratch: layer-1 output on the tile (residual)
    """
    C = x_ref.shape[1]
    TT = x_ref.shape[2]
    E1 = TT + 2 * PAD2                       # extended extent needed by layer 2
    D2 = DILATIONS[1]
    bf16 = act_ref.dtype

    j = pl.program_id(1)
    is_first = j == 0
    is_last = j == pl.num_programs(1) - 1

    halo = halo_ref[0, 0]                                      # (C, 2*HALO)

    # ---- layer-1 input: activated (lrelu, bf16) haloed slab, built ONCE -----
    act_ref[:, :HALO] = _leaky_relu(halo[:, :HALO]).astype(bf16)
    act_ref[:, HALO:HALO + TT] = _leaky_relu(x_ref[0]).astype(bf16)
    act_ref[:, HALO + TT:] = _leaky_relu(halo[:, HALO:]).astype(bf16)

    # Stack the 3 dilation-1 taps along K -> single (C,3C)@(3C,E1) MXU matmul.
    for k in range(KERNEL_SIZE):
        stack_ref[k * C:(k + 1) * C, :] = act_ref[:, k:k + E1]
    acc1 = jnp.dot(w1_ref[...], stack_ref[...],
                   preferred_element_type=jnp.float32) + b1_ref[...]

    # ---- layer-1 residual on the extended range, straight from x / halo -----
    res_mid = acc1[:, PAD2:PAD2 + TT] + x_ref[0].astype(jnp.float32)
    res_left = acc1[:, :PAD2] + halo[:, PAD1:HALO].astype(jnp.float32)
    res_right = acc1[:, PAD2 + TT:] + halo[:, HALO:HALO + PAD2].astype(jnp.float32)
    res_ref[...] = res_mid                    # f32, feeds the final residual add

    # Layer-2 input = lrelu(res1).  Only the PAD2 edge columns can fall outside
    # [0, T); they must read as Conv1d zero padding (lrelu(0) == 0), so only
    # those tiny columns are masked, and only on boundary tiles.
    act_ref[:, PAD2:PAD2 + TT] = _leaky_relu(res_mid).astype(bf16)
    act_ref[:, :PAD2] = jnp.where(is_first, 0.0,
                                  _leaky_relu(res_left)).astype(bf16)
    act_ref[:, PAD2 + TT:E1] = jnp.where(is_last, 0.0,
                                         _leaky_relu(res_right)).astype(bf16)

    # ---- layer 2: stacked dilation-3 taps -> single matmul -> residual ------
    for k in range(KERNEL_SIZE):
        stack_ref[k * C:(k + 1) * C, :TT] = act_ref[:, k * D2:k * D2 + TT]
    acc2 = jnp.dot(w2_ref[...], stack_ref[:, :TT],
                   preferred_element_type=jnp.float32) + b2_ref[...]
    o_ref[0] = (acc2 + res_ref[...]).astype(o_ref.dtype)


def _vmem_capacity_bytes():
    try:
        return int(pltpu.get_tpu_info().vmem_capacity_bytes)
    except Exception:
        return 64 * 1024 * 1024               # conservative (v7x per-core VMEM)


def _footprint_bytes(C, TT, itemsize):
    """Exact VMEM working set of the kernel for one (C, TT) tile."""
    E1 = TT + 2 * PAD2
    act = C * (TT + 2 * HALO) * 2                      # bf16 activated slab
    stack = KERNEL_SIZE * C * E1 * 2                   # bf16 stacked taps
    res = C * TT * 4                                   # f32 layer-1 output
    xio = 2 * 2 * C * TT * itemsize                    # x + out, double-buffered
    halo = 2 * C * 2 * HALO * itemsize
    wts = 2 * 2 * (KERNEL_SIZE * C * C * 2 + C * 4)    # both layers, 2 buffers
    return act + stack + res + xio + halo + wts


def _pick_time_tile(T, C, itemsize):
    """Largest tile whose working set fits comfortably in this chip's VMEM."""
    budget = int(_vmem_capacity_bytes() * 0.4)   # headroom for compiler scratch
    for tt in (4096, 2048, 1024, 512, 256, 128):
        if T % tt == 0 and _footprint_bytes(C, tt, itemsize) <= budget:
            return tt
    # TODO(synk): ragged T (not a multiple of 128) should be host-padded to a
    # multiple of 128 and the tail masked; the fallback runs one tile per row.
    return T


def _build_halos(x, tt):
    """(B, nt, C, 2*HALO): the HALO columns of x immediately left/right of each
    time tile, zeros at the global sequence boundaries.  Output is tiny
    (~2*HALO/tt of x); XLA fuses the pad/slice so x is not fully copied."""
    B, C, T = x.shape
    nt = T // tt
    xp = jnp.pad(x, ((0, 0), (0, 0), (HALO, tt + HALO)))
    left = xp[:, :, :nt * tt].reshape(B, C, nt, tt)[..., :HALO]
    right = xp[:, :, tt + HALO:tt + HALO + nt * tt].reshape(B, C, nt, tt)[..., :HALO]
    halos = jnp.concatenate([left, right], axis=-1)        # (B, C, nt, 2*HALO)
    return jnp.transpose(halos, (0, 2, 1, 3))              # (B, nt, C, 2*HALO)


def resblock2_forward(x, params, t_tile=None):
    """ResBlock2.forward: both residual dilated-conv layers in ONE pallas_call.

    x:      (B, C, T) activations (NCT, same as PyTorch Conv1d NCW layout)
    params: [(w1, b1, 1), (w2, b2, 3)] with w in PyTorch layout (C_out, C_in, 3)
    """
    (w1, b1, d1), (w2, b2, d2) = params
    assert (d1, d2) == DILATIONS
    B, C, T = x.shape
    TT = t_tile if t_tile is not None else _pick_time_tile(T, C, x.dtype.itemsize)
    assert T % TT == 0, "time tile must divide T"
    nt = T // TT

    # Tap-concatenated (C_out, 3*C_in) bf16 weights: K=3C so each layer is a
    # single MXU matmul.  Row-block k of the K axis is tap k.
    w1_cat = jnp.transpose(w1, (0, 2, 1)).reshape(C, KERNEL_SIZE * C).astype(jnp.bfloat16)
    w2_cat = jnp.transpose(w2, (0, 2, 1)).reshape(C, KERNEL_SIZE * C).astype(jnp.bfloat16)
    b1_c = b1.reshape(C, 1).astype(jnp.float32)
    b2_c = b2.reshape(C, 1).astype(jnp.float32)
    halos = _build_halos(x, TT)

    cap = _vmem_capacity_bytes()
    est = _footprint_bytes(C, TT, x.dtype.itemsize)
    vmem_limit = int(min(max(est * 5 // 4, 16 * 1024 * 1024), cap * 3 // 4))

    return pl.pallas_call(
        _resblock2_kernel,
        out_shape=jax.ShapeDtypeStruct((B, C, T), x.dtype),
        grid=(B, nt),
        in_specs=[
            pl.BlockSpec((1, C, TT), lambda b, j: (b, 0, j)),
            pl.BlockSpec((1, 1, C, 2 * HALO), lambda b, j: (b, j, 0, 0)),
            pl.BlockSpec((C, KERNEL_SIZE * C), lambda b, j: (0, 0)),
            pl.BlockSpec((C, 1), lambda b, j: (0, 0)),
            pl.BlockSpec((C, KERNEL_SIZE * C), lambda b, j: (0, 0)),
            pl.BlockSpec((C, 1), lambda b, j: (0, 0)),
        ],
        out_specs=pl.BlockSpec((1, C, TT), lambda b, j: (b, 0, j)),
        scratch_shapes=[
            pltpu.VMEM((C, TT + 2 * HALO), jnp.bfloat16),                # act
            pltpu.VMEM((KERNEL_SIZE * C, TT + 2 * PAD2), jnp.bfloat16),  # stacked taps
            pltpu.VMEM((C, TT), jnp.float32),                            # layer-1 out
        ],
        compiler_params=pltpu.CompilerParams(
            dimension_semantics=("parallel", "parallel"),
            vmem_limit_bytes=vmem_limit,
        ),
    )(x, halos, w1_cat, b1_c, w2_cat, b2_c)


def make_resblock2_params(key, channels, kernel_size=3, dilation=(1, 3),
                          dtype=jnp.float32):
    """Deterministic parameter init mirroring init_weights: W ~ N(0, 0.01)."""
    params = []
    for i, d in enumerate(dilation):
        kw, kb = jax.random.split(jax.random.fold_in(key, i))
        w = 0.01 * jax.random.normal(
            kw, (channels, channels, kernel_size), dtype=dtype)
        bound = 1.0 / jnp.sqrt(channels * kernel_size)
        b = jax.random.uniform(kb, (channels,), dtype=dtype,
                               minval=-bound, maxval=bound)
        params.append((w, b, d))
    return params


def _reference_forward(x, params):
    """Pure-JAX reference (un-fused, f32) for a numerical sanity check."""
    for (w, b, d) in params:
        xt = jnp.where(x > 0, x, LRELU_SLOPE * x)
        pad = get_padding(KERNEL_SIZE, d)
        y = jax.lax.conv_general_dilated(
            xt, w, window_strides=(1,), padding=[(pad, pad)],
            rhs_dilation=(d,), dimension_numbers=("NCH", "OIH", "NCH"))
        x = y + b[None, :, None] + x
    return x


if __name__ == "__main__":
    key = jax.random.PRNGKey(0)
    k_x, k_p = jax.random.split(key)

    B, C, T = 2, 4, 16                       # small NCT input
    x = jax.random.normal(k_x, (B, C, T), dtype=jnp.float32)
    params = make_resblock2_params(k_p, channels=C)

    out = jax.block_until_ready(resblock2_forward(x, params))
    assert out.shape == (B, C, T)

    ref = jax.block_until_ready(_reference_forward(x, params))
    max_err = float(jnp.max(jnp.abs(out - ref)))
    assert max_err < 1e-2, f"kernel mismatch vs reference: {max_err}"

    print("KERNEL_OK")
</pallas_src>

<mosaic_0001>
module attributes {stable_mosaic.version = 11 : i64} {
  func.func @_resblock2_kernel(%arg0: i32, %arg1: i32, %arg2: memref<1x4x16xf32, #tpu.memory_space<vmem>>, %arg3: memref<1x1x4x8xf32, #tpu.memory_space<vmem>>, %arg4: memref<4x12xbf16, #tpu.memory_space<vmem>>, %arg5: memref<4x1xf32, #tpu.memory_space<vmem>>, %arg6: memref<4x12xbf16, #tpu.memory_space<vmem>>, %arg7: memref<4x1xf32, #tpu.memory_space<vmem>>, %arg8: memref<1x4x16xf32, #tpu.memory_space<vmem>>, %arg9: memref<4x24xbf16, #tpu.memory_space<vmem>>, %arg10: memref<12x22xbf16, #tpu.memory_space<vmem>>, %arg11: memref<4x16xf32, #tpu.memory_space<vmem>>) attributes {dimension_semantics = [#tpu.dimension_semantics<parallel>, #tpu.dimension_semantics<parallel>], iteration_bounds = array<i64: 2, 1>, scalar_prefetch = 0 : i64, scratch_operands = 3 : i64, tpu.core_type = #tpu.core_type<tc>, window_params = [{transform_indices = @transform_0, window_bounds = array<i64: 1, 4, 16>}, {transform_indices = @transform_1, window_bounds = array<i64: 1, 1, 4, 8>}, {pipeline_mode = #tpu.pipeline_mode<synchronous>, transform_indices = @transform_2, window_bounds = array<i64: 4, 12>}, {pipeline_mode = #tpu.pipeline_mode<synchronous>, transform_indices = @transform_3, window_bounds = array<i64: 4, 1>}, {pipeline_mode = #tpu.pipeline_mode<synchronous>, transform_indices = @transform_4, window_bounds = array<i64: 4, 12>}, {pipeline_mode = #tpu.pipeline_mode<synchronous>, transform_indices = @transform_5, window_bounds = array<i64: 4, 1>}, {transform_indices = @transform_6, window_bounds = array<i64: 1, 4, 16>}]} {
    %c0_i32 = arith.constant 0 : i32
    %0 = arith.cmpi eq, %arg1, %c0_i32 : i32
    %c0_i32_0 = arith.constant 0 : i32
    %1 = arith.cmpi eq, %arg1, %c0_i32_0 : i32
    %c0 = arith.constant 0 : index
    %c0_1 = arith.constant 0 : index
    %c0_2 = arith.constant 0 : index
    %c0_3 = arith.constant 0 : index
    %2 = vector.load %arg3[%c0, %c0_1, %c0_2, %c0_3] : memref<1x1x4x8xf32, #tpu.memory_space<vmem>>, vector<1x1x4x8xf32>
    %3 = vector.shape_cast %2 : vector<1x1x4x8xf32> to vector<4x8xf32>
    %4 = vector.extract_strided_slice %3 {offsets = [0, 0], sizes = [4, 4], strides = [1, 1]} : vector<4x8xf32> to vector<4x4xf32>
    %cst = arith.constant 0.000000e+00 : f32
    %5 = vector.broadcast %cst : f32 to vector<4x4xf32>
    %6 = arith.cmpf ogt, %4, %5 : vector<4x4xf32>
    %cst_4 = arith.constant 1.000000e-01 : f32
    %7 = vector.broadcast %cst_4 : f32 to vector<4x4xf32>
    %8 = arith.mulf %7, %4 : vector<4x4xf32>
    %9 = arith.select %6, %4, %8 : vector<4x4xi1>, vector<4x4xf32>
    %10 = arith.truncf %9 : vector<4x4xf32> to vector<4x4xbf16>
    %c0_5 = arith.constant 0 : index
    %c0_6 = arith.constant 0 : index
    %11 = vector.load %arg9[%c0_5, %c0_6] : memref<4x24xbf16, #tpu.memory_space<vmem>>, vector<4x4xbf16>
    tpu.vector_store %arg9[%c0_5, %c0_6], %10 {strides = array<i32>} : memref<4x24xbf16, #tpu.memory_space<vmem>>, vector<4x4xbf16>,
    %c0_7 = arith.constant 0 : index
    %c0_8 = arith.constant 0 : index
    %c0_9 = arith.constant 0 : index
    %12 = vector.load %arg2[%c0_7, %c0_8, %c0_9] : memref<1x4x16xf32, #tpu.memory_space<vmem>>, vector<1x4x16xf32>
    %13 = vector.shape_cast %12 : vector<1x4x16xf32> to vector<4x16xf32>
    %cst_10 = arith.constant 0.000000e+00 : f32
    %14 = vector.broadcast %cst_10 : f32 to vector<4x16xf32>
    %15 = arith.cmpf ogt, %13, %14 : vector<4x16xf32>
    %cst_11 = arith.constant 1.000000e-01 : f32
    %16 = vector.broadcast %cst_11 : f32 to vector<4x16xf32>
    %17 = arith.mulf %16, %13 : vector<4x16xf32>
    %18 = arith.select %15, %13, %17 : vector<4x16xi1>, vector<4x16xf32>
    %19 = arith.truncf %18 : vector<4x16xf32> to vector<4x16xbf16>
    %c0_12 = arith.constant 0 : index
    %c4 = arith.constant 4 : index
    %20 = vector.load %arg9[%c0_12, %c4] : memref<4x24xbf16, #tpu.memory_space<vmem>>, vector<4x16xbf16>
    tpu.vector_store %arg9[%c0_12, %c4], %19 {strides = array<i32>} : memref<4x24xbf16, #tpu.memory_space<vmem>>, vector<4x16xbf16>,
    %21 = vector.extract_strided_slice %3 {offsets = [0, 4], sizes = [4, 4], strides = [1, 1]} : vector<4x8xf32> to vector<4x4xf32>
    %cst_13 = arith.constant 0.000000e+00 : f32
    %22 = vector.broadcast %cst_13 : f32 to vector<4x4xf32>
    %23 = arith.cmpf ogt, %21, %22 : vector<4x4xf32>
    %cst_14 = arith.constant 1.000000e-01 : f32
    %24 = vector.broadcast %cst_14 : f32 to vector<4x4xf32>
    %25 = arith.mulf %24, %21 : vector<4x4xf32>
    %26 = arith.select %23, %21, %25 : vector<4x4xi1>, vector<4x4xf32>
    %27 = arith.truncf %26 : vector<4x4xf32> to vector<4x4xbf16>
    %c0_15 = arith.constant 0 : index
    %c20 = arith.constant 20 : index
    %28 = vector.load %arg9[%c0_15, %c20] : memref<4x24xbf16, #tpu.memory_space<vmem>>, vector<4x4xbf16>
    tpu.vector_store %arg9[%c0_15, %c20], %27 {strides = array<i32>} : memref<4x24xbf16, #tpu.memory_space<vmem>>, vector<4x4xbf16>,
    %c0_16 = arith.constant 0 : index
    %c0_17 = arith.constant 0 : index
    %29 = vector.load %arg9[%c0_16, %c0_17] : memref<4x24xbf16, #tpu.memory_space<vmem>>, vector<4x22xbf16>
    %c0_18 = arith.constant 0 : index
    %c0_19 = arith.constant 0 : index
    %30 = vector.load %arg10[%c0_18, %c0_19] : memref<12x22xbf16, #tpu.memory_space<vmem>>, vector<4x22xbf16>
    tpu.vector_store %arg10[%c0_18, %c0_19], %29 {strides = array<i32>} : memref<12x22xbf16, #tpu.memory_space<vmem>>, vector<4x22xbf16>,
    %c0_20 = arith.constant 0 : index
    %c1 = arith.constant 1 : index
    %31 = vector.load %arg9[%c0_20, %c1] : memref<4x24xbf16, #tpu.memory_space<vmem>>, vector<4x22xbf16>
    %c4_21 = arith.constant 4 : index
    %c0_22 = arith.constant 0 : index
    %32 = vector.load %arg10[%c4_21, %c0_22] : memref<12x22xbf16, #tpu.memory_space<vmem>>, vector<4x22xbf16>
    tpu.vector_store %arg10[%c4_21, %c0_22], %31 {strides = array<i32>} : memref<12x22xbf16, #tpu.memory_space<vmem>>, vector<4x22xbf16>,
    %c0_23 = arith.constant 0 : index
    %c2 = arith.constant 2 : index
    %33 = vector.load %arg9[%c0_23, %c2] : memref<4x24xbf16, #tpu.memory_space<vmem>>, vector<4x22xbf16>
    %c8 = arith.constant 8 : index
    %c0_24 = arith.constant 0 : index
    %34 = vector.load %arg10[%c8, %c0_24] : memref<12x22xbf16, #tpu.memory_space<vmem>>, vector<4x22xbf16>
    tpu.vector_store %arg10[%c8, %c0_24], %33 {strides = array<i32>} : memref<12x22xbf16, #tpu.memory_space<vmem>>, vector<4x22xbf16>,
    %c0_25 = arith.constant 0 : index
    %c0_26 = arith.constant 0 : index
    %35 = vector.load %arg4[%c0_25, %c0_26] : memref<4x12xbf16, #tpu.memory_space<vmem>>, vector<4x12xbf16>
    %c0_27 = arith.constant 0 : index
    %c0_28 = arith.constant 0 : index
    %36 = vector.load %arg10[%c0_27, %c0_28] : memref<12x22xbf16, #tpu.memory_space<vmem>>, vector<12x22xbf16>
    %cst_29 = arith.constant dense<0.000000e+00> : vector<4x22xf32>
    %37 = tpu.matmul %35, %36, %cst_29 {dimension_numbers = #tpu.dot_dimension_numbers<[1], [0], [0], [1], [0, 0, 1, 1], [], []>} : vector<4x12xbf16>, vector<12x22xbf16>, vector<4x22xf32> -> vector<4x22xf32>
    %c0_30 = arith.constant 0 : index
    %c0_31 = arith.constant 0 : index
    %38 = vector.load %arg5[%c0_30, %c0_31] : memref<4x1xf32, #tpu.memory_space<vmem>>, vector<4x1xf32>
    %39 = vector.broadcast %38 : vector<4x1xf32> to vector<4x22xf32>
    %40 = arith.addf %37, %39 : vector<4x22xf32>
    %41 = vector.extract_strided_slice %40 {offsets = [0, 3], sizes = [4, 16], strides = [1, 1]} : vector<4x22xf32> to vector<4x16xf32>
    %c0_32 = arith.constant 0 : index
    %c0_33 = arith.constant 0 : index
    %c0_34 = arith.constant 0 : index
    %42 = vector.load %arg2[%c0_32, %c0_33, %c0_34] : memref<1x4x16xf32, #tpu.memory_space<vmem>>, vector<1x4x16xf32>
    %43 = vector.shape_cast %42 : vector<1x4x16xf32> to vector<4x16xf32>
    %44 = arith.addf %41, %43 : vector<4x16xf32>
    %45 = vector.extract_strided_slice %40 {offsets = [0, 0], sizes = [4, 3], strides = [1, 1]} : vector<4x22xf32> to vector<4x3xf32>
    %46 = vector.extract_strided_slice %3 {offsets = [0, 1], sizes = [4, 3], strides = [1, 1]} : vector<4x8xf32> to vector<4x3xf32>
    %47 = arith.addf %45, %46 : vector<4x3xf32>
    %48 = vector.extract_strided_slice %40 {offsets = [0, 19], sizes = [4, 3], strides = [1, 1]} : vector<4x22xf32> to vector<4x3xf32>
    %49 = vector.extract_strided_slice %3 {offsets = [0, 4], sizes = [4, 3], strides = [1, 1]} : vector<4x8xf32> to vector<4x3xf32>
    %50 = arith.addf %48, %49 : vector<4x3xf32>
    %c0_35 = arith.constant 0 : index
    %c0_36 = arith.constant 0 : index
    %51 = vector.load %arg11[%c0_35, %c0_36] : memref<4x16xf32, #tpu.memory_space<vmem>>, vector<4x16xf32>
    tpu.vector_store %arg11[%c0_35, %c0_36], %44 {strides = array<i32>} : memref<4x16xf32, #tpu.memory_space<vmem>>, vector<4x16xf32>,
    %cst_37 = arith.constant 0.000000e+00 : f32
    %52 = vector.broadcast %cst_37 : f32 to vector<4x16xf32>
    %53 = arith.cmpf ogt, %44, %52 : vector<4x16xf32>
    %cst_38 = arith.constant 1.000000e-01 : f32
    %54 = vector.broadcast %cst_38 : f32 to vector<4x16xf32>
    %55 = arith.mulf %54, %44 : vector<4x16xf32>
    %56 = arith.select %53, %44, %55 : vector<4x16xi1>, vector<4x16xf32>
    %57 = arith.truncf %56 : vector<4x16xf32> to vector<4x16xbf16>
    %c0_39 = arith.constant 0 : index
    %c3 = arith.constant 3 : index
    %58 = vector.load %arg9[%c0_39, %c3] : memref<4x24xbf16, #tpu.memory_space<vmem>>, vector<4x16xbf16>
    tpu.vector_store %arg9[%c0_39, %c3], %57 {strides = array<i32>} : memref<4x24xbf16, #tpu.memory_space<vmem>>, vector<4x16xbf16>,
    %cst_40 = arith.constant 0.000000e+00 : f32
    %59 = vector.broadcast %cst_40 : f32 to vector<4x3xf32>
    %60 = arith.cmpf ogt, %47, %59 : vector<4x3xf32>
    %cst_41 = arith.constant 1.000000e-01 : f32
    %61 = vector.broadcast %cst_41 : f32 to vector<4x3xf32>
    %62 = arith.mulf %61, %47 : vector<4x3xf32>
    %63 = arith.select %60, %47, %62 : vector<4x3xi1>, vector<4x3xf32>
    %cst_42 = arith.constant 0.000000e+00 : f32
    %64 = vector.broadcast %cst_42 : f32 to vector<4x3xf32>
    %65 = arith.select %0, %64, %63 : vector<4x3xf32>
    %66 = arith.truncf %65 : vector<4x3xf32> to vector<4x3xbf16>
    %c0_43 = arith.constant 0 : index
    %c0_44 = arith.constant 0 : index
    %67 = vector.load %arg9[%c0_43, %c0_44] : memref<4x24xbf16, #tpu.memory_space<vmem>>, vector<4x3xbf16>
    tpu.vector_store %arg9[%c0_43, %c0_44], %66 {strides = array<i32>} : memref<4x24xbf16, #tpu.memory_space<vmem>>, vector<4x3xbf16>,
    %cst_45 = arith.constant 0.000000e+00 : f32
    %68 = vector.broadcast %cst_45 : f32 to vector<4x3xf32>
    %69 = arith.cmpf ogt, %50, %68 : vector<4x3xf32>
    %cst_46 = arith.constant 1.000000e-01 : f32
    %70 = vector.broadcast %cst_46 : f32 to vector<4x3xf32>
    %71 = arith.mulf %70, %50 : vector<4x3xf32>
    %72 = arith.select %69, %50, %71 : vector<4x3xi1>, vector<4x3xf32>
    %cst_47 = arith.constant 0.000000e+00 : f32
    %73 = vector.broadcast %cst_47 : f32 to vector<4x3xf32>
    %74 = arith.select %1, %73, %72 : vector<4x3xf32>
    %75 = arith.truncf %74 : vector<4x3xf32> to vector<4x3xbf16>
    %c0_48 = arith.constant 0 : index
    %c19 = arith.constant 19 : index
    %76 = vector.load %arg9[%c0_48, %c19] : memref<4x24xbf16, #tpu.memory_space<vmem>>, vector<4x3xbf16>
    tpu.vector_store %arg9[%c0_48, %c19], %75 {strides = array<i32>} : memref<4x24xbf16, #tpu.memory_space<vmem>>, vector<4x3xbf16>,
    %c0_49 = arith.constant 0 : index
    %c0_50 = arith.constant 0 : index
    %77 = vector.load %arg9[%c0_49, %c0_50] : memref<4x24xbf16, #tpu.memory_space<vmem>>, vector<4x16xbf16>
    %c0_51 = arith.constant 0 : index
    %c0_52 = arith.constant 0 : index
    %78 = vector.load %arg10[%c0_51, %c0_52] : memref<12x22xbf16, #tpu.memory_space<vmem>>, vector<4x16xbf16>
    tpu.vector_store %arg10[%c0_51, %c0_52], %77 {strides = array<i32>} : memref<12x22xbf16, #tpu.memory_space<vmem>>, vector<4x16xbf16>,
    %c0_53 = arith.constant 0 : index
    %c3_54 = arith.constant 3 : index
    %79 = vector.load %arg9[%c0_53, %c3_54] : memref<4x24xbf16, #tpu.memory_space<vmem>>, vector<4x16xbf16>
    %c4_55 = arith.constant 4 : index
    %c0_56 = arith.constant 0 : index
    %80 = vector.load %arg10[%c4_55, %c0_56] : memref<12x22xbf16, #tpu.memory_space<vmem>>, vector<4x16xbf16>
    tpu.vector_store %arg10[%c4_55, %c0_56], %79 {strides = array<i32>} : memref<12x22xbf16, #tpu.memory_space<vmem>>, vector<4x16xbf16>,
    %c0_57 = arith.constant 0 : index
    %c6 = arith.constant 6 : index
    %81 = vector.load %arg9[%c0_57, %c6] : memref<4x24xbf16, #tpu.memory_space<vmem>>, vector<4x16xbf16>
    %c8_58 = arith.constant 8 : index
    %c0_59 = arith.constant 0 : index
    %82 = vector.load %arg10[%c8_58, %c0_59] : memref<12x22xbf16, #tpu.memory_space<vmem>>, vector<4x16xbf16>
    tpu.vector_store %arg10[%c8_58, %c0_59], %81 {strides = array<i32>} : memref<12x22xbf16, #tpu.memory_space<vmem>>, vector<4x16xbf16>,
    %c0_60 = arith.constant 0 : index
    %c0_61 = arith.constant 0 : index
    %83 = vector.load %arg6[%c0_60, %c0_61] : memref<4x12xbf16, #tpu.memory_space<vmem>>, vector<4x12xbf16>
    %c0_62 = arith.constant 0 : index
    %c0_63 = arith.constant 0 : index
    %84 = vector.load %arg10[%c0_62, %c0_63] : memref<12x22xbf16, #tpu.memory_space<vmem>>, vector<12x16xbf16>
    %cst_64 = arith.constant dense<0.000000e+00> : vector<4x16xf32>
    %85 = tpu.matmul %83, %84, %cst_64 {dimension_numbers = #tpu.dot_dimension_numbers<[1], [0], [0], [1], [0, 0, 1, 1], [], []>} : vector<4x12xbf16>, vector<12x16xbf16>, vector<4x16xf32> -> vector<4x16xf32>
    %c0_65 = arith.constant 0 : index
    %c0_66 = arith.constant 0 : index
    %86 = vector.load %arg7[%c0_65, %c0_66] : memref<4x1xf32, #tpu.memory_space<vmem>>, vector<4x1xf32>
    %87 = vector.broadcast %86 : vector<4x1xf32> to vector<4x16xf32>
    %88 = arith.addf %85, %87 : vector<4x16xf32>
    %c0_67 = arith.constant 0 : index
    %c0_68 = arith.constant 0 : index
    %89 = vector.load %arg11[%c0_67, %c0_68] : memref<4x16xf32, #tpu.memory_space<vmem>>, vector<4x16xf32>
    %90 = arith.addf %88, %89 : vector<4x16xf32>
    %c0_69 = arith.constant 0 : index
    %c0_70 = arith.constant 0 : index
    %c0_71 = arith.constant 0 : index
    %91 = vector.load %arg8[%c0_69, %c0_70, %c0_71] : memref<1x4x16xf32, #tpu.memory_space<vmem>>, vector<1x4x16xf32>
    %92 = vector.shape_cast %91 : vector<1x4x16xf32> to vector<4x16xf32>
    %93 = vector.shape_cast %90 : vector<4x16xf32> to vector<1x4x16xf32>
    tpu.vector_store %arg8[%c0_69, %c0_70, %c0_71], %93 {strides = array<i32>} : memref<1x4x16xf32, #tpu.memory_space<vmem>>, vector<1x4x16xf32>,
    return
  }
  func.func @transform_0(%arg0: i32, %arg1: i32) -> (i32, i32, i32) {
    %c0_i32 = arith.constant 0 : i32
    %c0_i32_0 = arith.constant 0 : i32
    return %arg0, %c0_i32, %arg1 : i32, i32, i32
  }
  func.func @transform_1(%arg0: i32, %arg1: i32) -> (i32, i32, i32, i32) {
    %c0_i32 = arith.constant 0 : i32
    %c0_i32_0 = arith.constant 0 : i32
    %c0_i32_1 = arith.constant 0 : i32
    return %arg0, %arg1, %c0_i32, %c0_i32_0 : i32, i32, i32, i32
  }
  func.func @transform_2(%arg0: i32, %arg1: i32) -> (i32, i32) {
    %c0_i32 = arith.constant 0 : i32
    %c0_i32_0 = arith.constant 0 : i32
    %c0_i32_1 = arith.constant 0 : i32
    return %c0_i32, %c0_i32_0 : i32, i32
  }
  func.func @transform_3(%arg0: i32, %arg1: i32) -> (i32, i32) {
    %c0_i32 = arith.constant 0 : i32
    %c0_i32_0 = arith.constant 0 : i32
    %c0_i32_1 = arith.constant 0 : i32
    return %c0_i32, %c0_i32_0 : i32, i32
  }
  func.func @transform_4(%arg0: i32, %arg1: i32) -> (i32, i32) {
    %c0_i32 = arith.constant 0 : i32
    %c0_i32_0 = arith.constant 0 : i32
    %c0_i32_1 = arith.constant 0 : i32
    return %c0_i32, %c0_i32_0 : i32, i32
  }
  func.func @transform_5(%arg0: i32, %arg1: i32) -> (i32, i32) {
    %c0_i32 = arith.constant 0 : i32
    %c0_i32_0 = arith.constant 0 : i32
    %c0_i32_1 = arith.constant 0 : i32
    return %c0_i32, %c0_i32_0 : i32, i32
  }
  func.func @transform_6(%arg0: i32, %arg1: i32) -> (i32, i32, i32) {
    %c0_i32 = arith.constant 0 : i32
    %c0_i32_0 = arith.constant 0 : i32
    return %arg0, %c0_i32, %arg1 : i32, i32, i32
  }
}

</mosaic_0001>

<llo_original>
// kernel: tpu_custom_call.1
$region0: #{tpu_custom_call.1}
  #allocation0 [shape = 'u32[]', space=smem, size = 0x4, offset = 0x4, fixed_abs, tag = 'smem constant byte address 0x4 - core index']
  #allocation1 [shape = 'u32[72,128]{1,0:T(1,128)}', space=vmem, size = 0x9000, scoped, tag = 'internal scratch']
  #allocation2 [shape = 'bf16[4,24]{1,0:T(4,128)(2,1)}', space=vmem, size = 0x400, scoped, tag = 'scratch operand']
  #allocation3 [shape = 'bf16[12,22]{1,0:T(8,128)(2,1)}', space=vmem, size = 0x1000, scoped, tag = 'scratch operand']
  #allocation4 [shape = 'f32[4,16]{1,0:T(4,128)}', space=vmem, size = 0x800, scoped, tag = 'scratch operand']
  %s0 = inlined_call_operand.vmem [shape: f32[2,4,16], index: 0, kind: input, shape index: {}]
  %s1 = inlined_call_operand.hbm [shape: f32[2,1,4,8], index: 1, kind: input, shape index: {}]
  %s2 = inlined_call_operand.hbm [shape: bf16[4,12], index: 2, kind: input, shape index: {}]
  %s3 = inlined_call_operand.vmem [shape: f32[4,1], index: 3, kind: input, shape index: {}]
  %s4 = inlined_call_operand.vmem [shape: bf16[4,12], index: 4, kind: input, shape index: {}]
  %s5 = inlined_call_operand.vmem [shape: f32[4,1], index: 5, kind: input, shape index: {}]
  %s6 = inlined_call_operand.hbm [shape: f32[2,4,16], index: 6, kind: output, shape index: {}]
  %s7 = sld [smem:[#allocation0]]
  $region65: #{tpu_custom_call.1} parent=0
    _
  %s9 = ssub.s32 1, %s7
  %s10 = scalar_select 0, %s9, %s7
  $region1: #{tpu_custom_call.1} parent=0
    #allocation5 [shape = 'u8[4096]{0}', space=vmem, size = 0x1000, scoped, tag = 'input window, operand 1']
    #allocation6 [shape = 's32[2]{0}', space=sflag, size = 0x8, scoped, tag = 'scoped memory for tpu_custom_call.1']
    #allocation7 [shape = 's32[2]{0}', space=sflag, size = 0x8, scoped, tag = 'scoped memory for tpu_custom_call.1']
    #allocation8 [shape = 'u8[1024]{0}', space=vmem, size = 0x400, scoped, tag = 'input window, operand 2, single buffered']
    #allocation9 [shape = 's32[1]{0}', space=sflag, size = 0x4, scoped, tag = 'scoped memory for tpu_custom_call.1']
    #allocation10 [shape = 'u8[4096]{0}', space=vmem, size = 0x1000, scoped, tag = 'output window, operand 0']
    %11 = vsyncpa [#allocation6], 0
    %s12 = scalar_lea.sflag [#allocation6], 1
    %13 = vsyncpa %s12, 0
    %14 = vsyncpa [#allocation9], 0
    %15 = vsyncpa [#allocation7], 0
    %s16 = scalar_lea.sflag [#allocation7], 1
    %17 = vsyncpa %s16, 0
    loop: start=0, step=1, limit=4
    $region2: #{tpu_custom_call.1} parent=1 // loop_pre_header
      _
    $region3: #{tpu_custom_call.1} parent=1 // loop_header
      %s19 = sphi 0, %s23
      %p20 = scmp.ge.s32.totalorder %s19, 4
      %s26 = sphi 0, %s38
      %s27 = sphi 0, %s34
      %s28 = sphi 0, %s26
      %s29 = sphi 0, %s27
      %s30 = sphi 0, %s28
      %s31 = sphi 0, %s29
      %s43 = sphi 0, %s45
      %s46 = sphi 0, %s43
      %s47 = sphi 0, %s46
      %s63 = sphi 0, %s47
      %s71 = sphi 0, %s73
      %s74 = sphi 0, %s71
      %s75 = sphi 0, %s74
      %s91 = sphi 0, %s75
      %s95 = sphi 0, %s95
      %s97 = sphi 0, %s95
      %s98 = sphi 0, %s97
      %s112 = sphi 0, %s98
      %s116 = sphi 0, %s116
      %s118 = sphi 0, %s116
      %s119 = sphi 0, %s118
      %s133 = sphi 0, %s119
      %s137 = sphi 0, %s137
      %s139 = sphi 0, %s137
      %s140 = sphi 0, %s139
      %s154 = sphi 0, %s140
      %s158 = sphi 0, %s158
      %s160 = sphi 0, %s158
      %s161 = sphi 0, %s160
      %s175 = sphi 0, %s161
      %s183 = sphi 0, %s185
      %s186 = sphi 0, %s183
      %s187 = sphi 0, %s186
      %s203 = sphi 0, %s187
    $region4: #{tpu_custom_call.1} parent=1 // loop_header_branch
      %22 = sbr.rel (%p20) target = $region8
    $region5: #{tpu_custom_call.1} parent=1 // loop_body
      %s24 = ssub.s32 %s19, 1
      %s25 = ssub.s32 %s19, 2
      %s32 = sadd.s32 1, %s27
      %p33 = scmp.ge.s32.totalorder %s32, 1
      %s34 = scalar_select %p33, 0, %s32
      %s35 = sadd.s32 1, %s26
      %s36 = scalar_select %p33, %s35, %s26
      %p37 = scmp.ge.s32.totalorder %s36, 2
      %s38 = scalar_select %p37, 0, %s36
      %s39 = ssub.s32 %s26, %s38
      %s40 = ssub.s32 %s27, %s34
      %s41 = sor.u32 %s39, %s40
      %p42 = scmp.eq.s32.totalorder %s41, 0
      %s44 = sadd.s32 %s43, 1
      %s45 = scalar_select %p42, %s43, %s44
      %p48 = pneg %p42
      %p49 = scmp.eq.s32.totalorder %s19, 1
      %p50 = por %p48, %p49
      %p51 = scmp.ne.s32.totalorder %s43, %s46
      %p52 = scmp.eq.s32.totalorder %s19, 0
      %p53 = por %p51, %p52
      %p54 = scmp.ne.s32.totalorder %s43, %s46
      %p55 = scmp.eq.s32.totalorder %s24, 1
      %p56 = por %p54, %p55
      %p57 = scmp.ne.s32.totalorder %s46, %s47
      %p58 = scmp.eq.s32.totalorder %s24, 0
      %p59 = por %p57, %p58
      %p60 = scmp.ne.s32.totalorder %s46, %s47
      %p61 = scmp.eq.s32.totalorder %s25, 1
      %p62 = por %p60, %p61
      %p64 = scmp.ne.s32.totalorder %s47, %s63
      %p65 = scmp.eq.s32.totalorder %s25, 0
      %p66 = por %p64, %p65
      %s67 = ssub.s32 %s26, %s38
      %s68 = ssub.s32 %s27, %s34
      %s69 = sor.u32 %s67, %s68
      %p70 = scmp.eq.s32.totalorder %s69, 0
      %s72 = sadd.s32 %s71, 1
      %s73 = scalar_select %p70, %s71, %s72
      %p76 = pneg %p70
      %p77 = scmp.eq.s32.totalorder %s19, 1
      %p78 = por %p76, %p77
      %p79 = scmp.ne.s32.totalorder %s71, %s74
      %p80 = scmp.eq.s32.totalorder %s19, 0
      %p81 = por %p79, %p80
      %p82 = scmp.ne.s32.totalorder %s71, %s74
      %p83 = scmp.eq.s32.totalorder %s24, 1
      %p84 = por %p82, %p83
      %p85 = scmp.ne.s32.totalorder %s74, %s75
      %p86 = scmp.eq.s32.totalorder %s24, 0
      %p87 = por %p85, %p86
      %p88 = scmp.ne.s32.totalorder %s74, %s75
      %p89 = scmp.eq.s32.totalorder %s25, 1
      %p90 = por %p88, %p89
      %p92 = scmp.ne.s32.totalorder %s75, %s91
      %p93 = scmp.eq.s32.totalorder %s25, 0
      %p94 = por %p92, %p93
      %s96 = sadd.s32 %s95, 1
      %p99 = scmp.eq.s32.totalorder %s19, 1
      %p100 = scmp.ne.s32.totalorder %s95, %s97
      %p101 = scmp.eq.s32.totalorder %s19, 0
      %p102 = por %p100, %p101
      %p103 = scmp.ne.s32.totalorder %s95, %s97
      %p104 = scmp.eq.s32.totalorder %s24, 1
      %p105 = por %p103, %p104
      %p106 = scmp.ne.s32.totalorder %s97, %s98
      %p107 = scmp.eq.s32.totalorder %s24, 0
      %p108 = por %p106, %p107
      %p109 = scmp.ne.s32.totalorder %s97, %s98
      %p110 = scmp.eq.s32.totalorder %s25, 1
      %p111 = por %p109, %p110
      %p113 = scmp.ne.s32.totalorder %s98, %s112
      %p114 = scmp.eq.s32.totalorder %s25, 0
      %p115 = por %p113, %p114
      %s117 = sadd.s32 %s116, 1
      %p120 = scmp.eq.s32.totalorder %s19, 1
      %p121 = scmp.ne.s32.totalorder %s116, %s118
      %p122 = scmp.eq.s32.totalorder %s19, 0
      %p123 = por %p121, %p122
      %p124 = scmp.ne.s32.totalorder %s116, %s118
      %p125 = scmp.eq.s32.totalorder %s24, 1
      %p126 = por %p124, %p125
      %p127 = scmp.ne.s32.totalorder %s118, %s119
      %p128 = scmp.eq.s32.totalorder %s24, 0
      %p129 = por %p127, %p128
      %p130 = scmp.ne.s32.totalorder %s118, %s119
      %p131 = scmp.eq.s32.totalorder %s25, 1
      %p132 = por %p130, %p131
      %p134 = scmp.ne.s32.totalorder %s119, %s133
      %p135 = scmp.eq.s32.totalorder %s25, 0
      %p136 = por %p134, %p135
      %s138 = sadd.s32 %s137, 1
      %p141 = scmp.eq.s32.totalorder %s19, 1
      %p142 = scmp.ne.s32.totalorder %s137, %s139
      %p143 = scmp.eq.s32.totalorder %s19, 0
      %p144 = por %p142, %p143
      %p145 = scmp.ne.s32.totalorder %s137, %s139
      %p146 = scmp.eq.s32.totalorder %s24, 1
      %p147 = por %p145, %p146
      %p148 = scmp.ne.s32.totalorder %s139, %s140
      %p149 = scmp.eq.s32.totalorder %s24, 0
      %p150 = por %p148, %p149
      %p151 = scmp.ne.s32.totalorder %s139, %s140
      %p152 = scmp.eq.s32.totalorder %s25, 1
      %p153 = por %p151, %p152
      %p155 = scmp.ne.s32.totalorder %s140, %s154
      %p156 = scmp.eq.s32.totalorder %s25, 0
      %p157 = por %p155, %p156
      %s159 = sadd.s32 %s158, 1
      %p162 = scmp.eq.s32.totalorder %s19, 1
      %p163 = scmp.ne.s32.totalorder %s158, %s160
      %p164 = scmp.eq.s32.totalorder %s19, 0
      %p165 = por %p163, %p164
      %p166 = scmp.ne.s32.totalorder %s158, %s160
      %p167 = scmp.eq.s32.totalorder %s24, 1
      %p168 = por %p166, %p167
      %p169 = scmp.ne.s32.totalorder %s160, %s161
      %p170 = scmp.eq.s32.totalorder %s24, 0
      %p171 = por %p169, %p170
      %p172 = scmp.ne.s32.totalorder %s160, %s161
      %p173 = scmp.eq.s32.totalorder %s25, 1
      %p174 = por %p172, %p173
      %p176 = scmp.ne.s32.totalorder %s161, %s175
      %p177 = scmp.eq.s32.totalorder %s25, 0
      %p178 = por %p176, %p177
      %s179 = ssub.s32 %s26, %s38
      %s180 = ssub.s32 %s27, %s34
      %s181 = sor.u32 %s179, %s180
      %p182 = scmp.eq.s32.totalorder %s181, 0
      %s184 = sadd.s32 %s183, 1
      %s185 = scalar_select %p182, %s183, %s184
      %p188 = pneg %p182
      %p189 = scmp.eq.s32.totalorder %s19, 1
      %p190 = por %p188, %p189
      %p191 = scmp.ne.s32.totalorder %s183, %s186
      %p192 = scmp.eq.s32.totalorder %s19, 0
      %p193 = por %p191, %p192
      %p194 = scmp.ne.s32.totalorder %s183, %s186
      %p195 = scmp.eq.s32.totalorder %s24, 1
      %p196 = por %p194, %p195
      %p197 = scmp.ne.s32.totalorder %s186, %s187
      %p198 = scmp.eq.s32.totalorder %s24, 0
      %p199 = por %p197, %p198
      %p200 = scmp.ne.s32.totalorder %s186, %s187
      %p201 = scmp.eq.s32.totalorder %s25, 1
      %p202 = por %p200, %p201
      %p204 = scmp.ne.s32.totalorder %s187, %s203
      %p205 = scmp.eq.s32.totalorder %s25, 0
      %p206 = por %p204, %p205
      %p207 = scmp.le.s32.totalorder 1, %s19
      %p208 = scmp.lt.s32.totalorder %s19, 3
      %p209 = pnand %p207, %p208
      %p210 = pneg %p209
      // Predicated region
      $region9: #{tpu_custom_call.1} parent=5 // pred_check
        _
      $region10: #{tpu_custom_call.1} parent=5 // pred_check_branch
        %212 = sbr.rel (%p209) target = $region12
      $region11: #{tpu_custom_call.1} parent=5 // pred_region
        %s213 = ssub.s32 %s19, 1
        // Predicated region
        $region13: #{tpu_custom_call.1} parent=11 // pred_check
          %p214 = pneg %p108
        $region14: #{tpu_custom_call.1} parent=11 // pred_check_branch
          %216 = sbr.rel (%p214) target = $region16
        $region15: #{tpu_custom_call.1} parent=11 // pred_region
          %218 = vsyncadd [#allocation9], 0
          %s220 = sshll.u32 %s2, 4
          %s221 = int_to_ptr.hbm [resolvable:$true] %s220
          %s222 = sshll.u32 [#allocation8], 4
          %s223 = int_to_ptr.vmem [resolvable:$true] %s222
          %225 = dma.hbm_to_vmem [thread:$0]  %s221, 32, %s223, [#allocation9]
        $region16: #{tpu_custom_call.1} parent=11 // pred_fallthru
          _
        // Predicated region
        $region17: #{tpu_custom_call.1} parent=11 // pred_check
          %p226 = pneg %p129
        $region18: #{tpu_custom_call.1} parent=11 // pred_check_branch
          %228 = sbr.rel (%p226) target = $region20
        $region19: #{tpu_custom_call.1} parent=11 // pred_region
          _
        $region20: #{tpu_custom_call.1} parent=11 // pred_fallthru
          _
        // Predicated region
        $region21: #{tpu_custom_call.1} parent=11 // pred_check
          %p229 = pneg %p150
        $region22: #{tpu_custom_call.1} parent=11 // pred_check_branch
          %231 = sbr.rel (%p229) target = $region24
        $region23: #{tpu_custom_call.1} parent=11 // pred_region
          _
        $region24: #{tpu_custom_call.1} parent=11 // pred_fallthru
          _
        // Predicated region
        $region25: #{tpu_custom_call.1} parent=11 // pred_check
          %p232 = pneg %p171
        $region26: #{tpu_custom_call.1} parent=11 // pred_check_branch
          %234 = sbr.rel (%p232) target = $region28
        $region27: #{tpu_custom_call.1} parent=11 // pred_region
          _
        $region28: #{tpu_custom_call.1} parent=11 // pred_fallthru
          _
      $region12: #{tpu_custom_call.1} parent=5 // pred_fallthru
        _
      %p235 = scmp.lt.s32.totalorder %s19, 2
      // Predicated region
      $region29: #{tpu_custom_call.1} parent=5 // pred_check
        %p236 = pneg %p235
      $region30: #{tpu_custom_call.1} parent=5 // pred_check_branch
        %238 = sbr.rel (%p236) target = $region32
      $region31: #{tpu_custom_call.1} parent=5 // pred_region
        // Predicated region
        $region33: #{tpu_custom_call.1} parent=31 // pred_check
          %p239 = pneg %p53
        $region34: #{tpu_custom_call.1} parent=31 // pred_check_branch
          %241 = sbr.rel (%p239) target = $region36
        $region35: #{tpu_custom_call.1} parent=31 // pred_region
          %p242 = scmp.lt.s32.totalorder %s26, 1
          %s243 = scalar_select %p242, %s26, 1
          %p244 = scmp.lt.s32.totalorder %s27, 0
          %s245 = scalar_select %p244, %s27, 0
          %s246 = sadd.s32 %s245, %s243
          %s247 = smul.addr %s246, 4
          %s248 = scalar_lea.vmem %s0, %s247
        $region36: #{tpu_custom_call.1} parent=31 // pred_fallthru
          _
        // Predicated region
        $region37: #{tpu_custom_call.1} parent=31 // pred_check
          %p249 = pneg %p81
        $region38: #{tpu_custom_call.1} parent=31 // pred_check_branch
          %251 = sbr.rel (%p249) target = $region40
        $region39: #{tpu_custom_call.1} parent=31 // pred_region
          %s252 = sand.u32 %s71, 1
          %s253 = scalar_lea.sflag [#allocation6], %s252
          %s254 = sand.u32 %s71, 1
          %s255 = smul.addr %s254, 4
          %s256 = scalar_lea.vmem [#allocation5], %s255
          %258 = vsyncadd %s253, 0
          %s259 = sadd.s32 %s27, %s26
          %s260 = smul.addr %s259, 4
          %s261 = scalar_lea.hbm %s1, %s260
          %s263 = sshll.u32 %s261, 4
          %s264 = int_to_ptr.hbm [resolvable:$true] %s263
          %s265 = sshll.u32 %s256, 4
          %s266 = int_to_ptr.vmem [resolvable:$true] %s265
          %268 = dma.hbm_to_vmem [thread:$0]  %s264, 64, %s266, %s253
        $region40: #{tpu_custom_call.1} parent=31 // pred_fallthru
          _
      $region32: #{tpu_custom_call.1} parent=5 // pred_fallthru
        _
      %p269 = scmp.le.s32.totalorder 1, %s19
      %p270 = scmp.lt.s32.totalorder %s19, 3
      %p271 = pnand %p269, %p270
      %p272 = pneg %p271
      // Predicated region
      $region41: #{tpu_custom_call.1} parent=5 // pred_check
        _
      $region42: #{tpu_custom_call.1} parent=5 // pred_check_branch
        %274 = sbr.rel (%p271) target = $region44
      $region43: #{tpu_custom_call.1} parent=5 // pred_region
        %s275 = ssub.s32 %s19, 1
        %s276 = sand.u32 %s74, 1
        %s277 = scalar_lea.sflag [#allocation6], %s276
        %s278 = sand.u32 %s74, 1
        %s279 = smul.addr %s278, 4
        %s280 = scalar_lea.vmem [#allocation5], %s279
        // Predicated region
        $region45: #{tpu_custom_call.1} parent=43 // pred_check
          %p281 = pneg %p87
        $region46: #{tpu_custom_call.1} parent=43 // pred_check_branch
          %283 = sbr.rel (%p281) target = $region48
        $region47: #{tpu_custom_call.1} parent=43 // pred_region
          %285 = dma.done %s277, 64
        $region48: #{tpu_custom_call.1} parent=43 // pred_fallthru
          _
        // Predicated region
        $region49: #{tpu_custom_call.1} parent=43 // pred_check
          %p286 = pneg %p108
        $region50: #{tpu_custom_call.1} parent=43 // pred_check_branch
          %288 = sbr.rel (%p286) target = $region52
        $region51: #{tpu_custom_call.1} parent=43 // pred_region
          %290 = dma.done [#allocation9], 32
        $region52: #{tpu_custom_call.1} parent=43 // pred_fallthru
          _
        %p291 = scmp.lt.s32.totalorder %s28, 1
        %s292 = scalar_select %p291, %s28, 1
        %p293 = scmp.lt.s32.totalorder %s29, 0
        %s294 = scalar_select %p293, %s29, 0
        %s295 = sadd.s32 %s294, %s292
        %s296 = smul.addr %s295, 4
        %s297 = scalar_lea.vmem %s0, %s296
        %p298 = pneg %p59
        %p299 = pneg %p56
        %s300 = sand.u32 %s74, 1
        %s301 = scalar_lea.sflag [#allocation6], %s300
        %s302 = sand.u32 %s74, 1
        %s303 = smul.addr %s302, 4
        %s304 = scalar_lea.vmem [#allocation5], %s303
        %p305 = pneg %p87
        %p306 = pneg %p84
        %p307 = pneg %p108
        %p308 = pneg %p105
        %p309 = pneg %p129
        %p310 = pneg %p126
        %p311 = pneg %p150
        %p312 = pneg %p147
        %p313 = pneg %p171
        %p314 = pneg %p168
        %p315 = pneg %p199
        %p316 = pneg %p196
        %s317 = sand.u32 %s186, 1
        %s318 = scalar_lea.sflag [#allocation7], %s317
        %s319 = sand.u32 %s186, 1
        %s320 = smul.addr %s319, 4
        %s321 = scalar_lea.vmem [#allocation10], %s320
        %p322 = scmp.lt.s32.totalorder %s28, 1
        %s323 = scalar_select %p322, %s28, 1
        %p324 = scmp.lt.s32.totalorder %s29, 0
        %s325 = scalar_select %p324, %s29, 0
        %s326 = sadd.s32 %s325, %s323
        %s327 = smul.addr %s326, 4
        %s328 = scalar_lea.vmem %s0, %s327
        %p330 = scmp.eq.s32.totalorder %s29, 0
        %v331 = vld [vmem:[%s280] sm:$0xf]
        %vm332 = vcmp.gt.f32.partialorder %v331, 0.0
        %v333 = vmul.f32 %v331, 0.1
        %v334 = vsel %vm332, %v331, %v333
        %v335 = vpack.c.bf16 %v334, %v334
        %vm336 = vcmask 25600
        %337 = vst.msk [vmem:[#allocation2] sm:$0x3] %vm336, %v335
        %v338 = vld [vmem:[%s328] sm:$0xf]
        %vm339 = vcmp.gt.f32.partialorder %v338, 0.0
        %v340 = vmul.f32 %v338, 0.1
        %v341 = vsel %vm339, %v338, %v340
        %v342 = vpack.c.bf16 %v341, %v341
        %v344 = vrot.slane %v342, 2
        %vm345 = vcmask 1041408
        %v348 = vsel %vm345, %v342, %v344
        %350 = vrot.lane.b32.xlu0 %v348, 4
        %v351 = vpop.permute.xlu0 %350
        %vm353 = vcmask 156704
        %354 = vst.msk [vmem:[#allocation2] sm:$0x3] %vm353, %v351
        %v356 = vrot.slane %v335, 2
        %v359 = vsel %vm345, %v335, %v356
        %361 = vrot.lane.b32.xlu0 %v359, 16
        %v362 = vpop.permute.xlu0 %361
        %vm364 = vcmask 189600
        %365 = vst.msk [vmem:[#allocation2] sm:$0x3] %vm364, %v362
        %v366 = vld [vmem:[#allocation2] sm:$0x3]
        %vm367 = vcmask 173056
        %368 = vst.msk [vmem:[#allocation3] sm:$0x3] %vm367, %v366
        %v369 = vld [vmem:[#allocation2] sm:$0x3]
        %s371 = scalar_lea.vmem [#allocation1], 1
        %372 = vst [vmem:[%s371] ss:$2 sm:$0xff] %v369
        %v373 = vld.sshfl [vmem:[#allocation1] sm:$0xff pattern:$0x75643120]
        %375 = vrot.lane.b32.xlu0 %v373, 127
        %v376 = vpop.permute.xlu0 %375
        %vm378 = vcmask 175106
        %379 = vst.msk [vmem:[#allocation3] sm:$0xc] %vm378, %v376
        %v380 = vld [vmem:[#allocation2] sm:$0x3]
        %382 = vst [vmem:[#allocation1] ss:$2 sm:$0xff] %v380
        %v383 = vld.sshfl [vmem:[#allocation1] sm:$0xff pattern:$0x75643120]
        %385 = vrot.lane.b32.xlu0 %v383, 126
        %v386 = vpop.permute.xlu0 %385
        %388 = vst.msk [vmem:[#allocation3 + $0x4] sm:$0x3] %vm367, %v386
        %v389 = vld [vmem:[#allocation8] sm:$0x3]
        %v390 = vld [vmem:[#allocation3] sm:$0xf]
        %v391 = vld [vmem:[#allocation3 + $0x4] sm:$0x3]
        %v392 = vld [vmem:[%s3] sm:$0xf]
        %394 = vset.pattern.permute.xlu0 0
        %395 = vperm.xlu0 %394, %v392
        %v396 = vpop.permute.xlu0 %395
        %v400 = vunpack.c.l.b16 %v390
        %v401 = vunpack.c.l.b16 %v391
        %v402 = vpack.c.b16 %v401, %v400
        %vm403 = vcmask 97280
        %v405 = vsel %vm403, %v389, 0
        %vm407 = vcmask 1045504
        %v409 = vsel %vm407, %v402, 0
        %411 = vmatpush.bf16.msra.mxu0 0
        %412 = vmatpush.bf16.msra.mxu0 0
        %413 = vmatpush.bf16.msra.mxu0 0
        %414 = vmatpush.bf16.msra.mxu0 0
        %415 = vmatpush.bf16.msra.mxu0 0
        %416 = vmatpush.bf16.msra.mxu0 0
        %417 = vmatpush.bf16.msra.mxu0 0
        %418 = vmatpush.bf16.msra.mxu0 %v409
        %419 = vmatmul.bf16.gmra.mxu0 %v405
        %v420 = vpop.f32.mrf.mxu0
        %v421 = vadd.f32 %v396, %v420
        %v422 = vpop.f32.mrf.mxu0
        %423 = vdwg.mxu0
        %v424 = vld [vmem:[%s328] sm:$0xf]
        %426 = vrot.lane.b32.xlu0 %v424, 3
        %v427 = vpop.permute.xlu0 %426
        %v429 = vadd.f32 %v421, %v427
        %431 = vrot.lane.b32.xlu0 %v331, 127
        %v432 = vpop.permute.xlu0 %431
        %v434 = vadd.f32 %v421, %v432
        %435 = vrot.lane.b32.xlu0 %v331, 15
        %v436 = vpop.permute.xlu0 %435
        %v438 = vadd.f32 %v421, %v436
        %440 = vrot.lane.b32.xlu0 %v429, 125
        %v441 = vpop.permute.xlu0 %440
        %vm443 = vcmask 125952
        %444 = vst.msk [vmem:[#allocation4] sm:$0xf] %vm443, %v441
        %vm445 = vcmp.gt.f32.partialorder %v429, 0.0
        %v446 = vmul.f32 %v429, 0.1
        %v447 = vsel %vm445, %v429, %v446
        %v448 = vpack.c.bf16 %v447, %v447
        %vm449 = vcmask 148504
        %450 = vst.msk [vmem:[#allocation2] sm:$0x3] %vm449, %v448
        %vm451 = vcmp.gt.f32.partialorder %v434, 0.0
        %v452 = vmul.f32 %v434, 0.1
        %v453 = vsel %vm451, %v434, %v452
        %s454 = scalar_select %p330, 1, 0
        %v455 = vstv %s454
        %vm456 = vcmp.eq.s32.totalorder %v455, 1
        %v457 = vsel %vm456, 0.0, %v453
        %v458 = vpack.c.bf16 %v457, %v457
        %vm459 = vcmask 17408
        %460 = vst.msk [vmem:[#allocation2] sm:$0x3] %vm459, %v458
        %vm461 = vcmp.gt.f32.partialorder %v438, 0.0
        %v462 = vmul.f32 %v438, 0.1
        %v463 = vsel %vm461, %v438, %v462
        %v464 = vsel %vm456, 0.0, %v463
        %v465 = vpack.c.bf16 %v464, %v464
        %vm466 = vcmask 173208
        %467 = vst.msk [vmem:[#allocation2] sm:$0x3] %vm466, %v465
        %v468 = vld [vmem:[#allocation2] sm:$0x3]
        %vm469 = vcmask 123904
        %470 = vst.msk [vmem:[#allocation3] sm:$0x3] %vm469, %v468
        %v471 = vld [vmem:[#allocation2] sm:$0x3]
        %s473 = scalar_lea.vmem [#allocation1], 1
        %474 = vst [vmem:[%s473] ss:$2 sm:$0xff] %v471
        %v475 = vld.sshfl [vmem:[#allocation1] sm:$0xff pattern:$0x75643120]
        %477 = vrot.lane.b32.xlu0 %v475, 125
        %v478 = vpop.permute.xlu0 %477
        %vm480 = vcmask 125954
        %481 = vst.msk [vmem:[#allocation3] sm:$0xc] %vm480, %v478
        %v482 = vld [vmem:[#allocation2] sm:$0x3]
        %484 = vst [vmem:[#allocation1] ss:$2 sm:$0xff] %v482
        %v485 = vld.sshfl [vmem:[#allocation1] sm:$0xff pattern:$0x75643120]
        %487 = vrot.lane.b32.xlu0 %v485, 122
        %v488 = vpop.permute.xlu0 %487
        %490 = vst.msk [vmem:[#allocation3 + $0x4] sm:$0x3] %vm469, %v488
        %v491 = vld [vmem:[%s4] sm:$0x3]
        %v492 = vld [vmem:[#allocation3] sm:$0xf]
        %v493 = vld [vmem:[#allocation3 + $0x4] sm:$0x3]
        %v494 = vld [vmem:[%s5] sm:$0xf]
        %496 = vset.pattern.permute.xlu0 0
        %497 = vperm.xlu0 %496, %v494
        %v498 = vpop.permute.xlu0 %497
        %v502 = vunpack.c.l.b16 %v492
        %v503 = vunpack.c.l.b16 %v493
        %v504 = vpack.c.b16 %v503, %v502
        %v506 = vsel %vm403, %v491, 0
        %v509 = vsel %vm407, %v504, 0
        %511 = vmatpush.bf16.msra.mxu0 0
        %512 = vmatpush.bf16.msra.mxu0 0
        %513 = vmatpush.bf16.msra.mxu0 0
        %514 = vmatpush.bf16.msra.mxu0 0
        %515 = vmatpush.bf16.msra.mxu0 0
        %516 = vmatpush.bf16.msra.mxu0 0
        %517 = vmatpush.bf16.msra.mxu0 0
        %518 = vmatpush.bf16.msra.mxu0 %v509
        %519 = vmatmul.bf16.gmra.mxu0 %v506
        %v520 = vpop.f32.mrf.mxu0
        %v521 = vadd.f32 %v498, %v520
        %v522 = vpop.f32.mrf.mxu0
        %523 = vdwg.mxu0
        %v524 = vld [vmem:[#allocation4] sm:$0xf]
        %v525 = vadd.f32 %v521, %v524
        %526 = vst.msk [vmem:[%s321] sm:$0xf] %vm443, %v525
        %s527 = sand.u32 %s186, 1
        %s528 = scalar_lea.sflag [#allocation7], %s527
        %s529 = sand.u32 %s186, 1
        %s530 = smul.addr %s529, 4
        %s531 = scalar_lea.vmem [#allocation10], %s530
        // Predicated region
        $region53: #{tpu_custom_call.1} parent=43 // pred_check
          %p532 = pneg %p196
        $region54: #{tpu_custom_call.1} parent=43 // pred_check_branch
          %534 = sbr.rel (%p532) target = $region56
        $region55: #{tpu_custom_call.1} parent=43 // pred_region
          %536 = vsyncadd %s528, 0
          %s537 = sadd.s32 %s29, %s28
          %s538 = smul.addr %s537, 4
          %s539 = scalar_lea.hbm %s6, %s538
          %s541 = sshll.u32 %s531, 4
          %s542 = int_to_ptr.vmem [resolvable:$true] %s541
          %s543 = sshll.u32 %s539, 4
          %s544 = int_to_ptr.hbm [resolvable:$true] %s543
          %546 = dma.vmem_to_hbm [thread:$0]  %s542, 64, %s544, %s528
        $region56: #{tpu_custom_call.1} parent=43 // pred_fallthru
          _
      $region44: #{tpu_custom_call.1} parent=5 // pred_fallthru
        _
      %p547 = scmp.le.s32.totalorder 2, %s19
      // Predicated region
      $region57: #{tpu_custom_call.1} parent=5 // pred_check
        %p548 = pneg %p547
      $region58: #{tpu_custom_call.1} parent=5 // pred_check_branch
        %550 = sbr.rel (%p548) target = $region60
      $region59: #{tpu_custom_call.1} parent=5 // pred_region
        %s551 = ssub.s32 %s19, 2
        // Predicated region
        $region61: #{tpu_custom_call.1} parent=59 // pred_check
          %p552 = pneg %p202
        $region62: #{tpu_custom_call.1} parent=59 // pred_check_branch
          %554 = sbr.rel (%p552) target = $region64
        $region63: #{tpu_custom_call.1} parent=59 // pred_region
          %s555 = sand.u32 %s187, 1
          %s556 = scalar_lea.sflag [#allocation7], %s555
          %s557 = sand.u32 %s187, 1
          %s558 = smul.addr %s557, 4
          %s559 = scalar_lea.vmem [#allocation10], %s558
          %561 = dma.done %s556, 64
        $region64: #{tpu_custom_call.1} parent=59 // pred_fallthru
          _
      $region60: #{tpu_custom_call.1} parent=5 // pred_fallthru
        _
    $region6: #{tpu_custom_call.1} parent=1 // loop_footer
      %s23 = sadd.s32 1, %s19
    $region7: #{tpu_custom_call.1} parent=1 // loop_footer_branch
      %18 = sbr.rel target = $region3
    $region8: #{tpu_custom_call.1} parent=1 // loop_exit
      _
    %562 = vsyncpa [#allocation6], 1
    %s563 = scalar_lea.sflag [#allocation6], 1
    %564 = vsyncpa %s563, 1
    %565 = vsyncpa [#allocation9], 1
    %566 = vsyncpa [#allocation7], 1
    %s567 = scalar_lea.sflag [#allocation7], 1
    %568 = vsyncpa %s567, 1

</llo_original>
